<compile_context>
chip_gen: v5e
topology: v5e:2x2
jax: 0.10.0
libtpu: 0.0.40
codegen_flags: <defaults>
</compile_context>

<pallas_src>
import jax
import jax.numpy as jnp
from jax.experimental import pallas as pl
from jax.experimental.pallas import tpu as pltpu

# ---- module hyper-parameters (small, consistent with the torch module) ------
SEQ_HIDDEN_DIM = 32      # stands in for net.config.text_config.hidden_size
REP_DIM        = 256
HIDDEN_DIM     = 100     # logical hidden width of value/policy encoders
HIDDEN_PAD     = 128     # lane-dense padded width (zero-padded params)
ACTION_DIM     = 3
HEAD_PAD       = 128     # packed small-output slab width (value|alpha|beta|0..)
OUT_W          = REP_DIM + 2 * HIDDEN_PAD + HEAD_PAD   # 640, lane-dense (5*128)
# torch nn.RMSNorm(eps=None) on float32 input -> eps = torch.finfo(float32).eps
RMS_EPS = 1.1920929e-07


def _round_up(n, m):
    return ((n + m - 1) // m) * m


# ----------------------------- Pallas kernel ---------------------------------
def _fused_kernel(s_ref, w_stub_ref,
                  w_lin_ref, b_lin_ref,
                  w_enc_ref, b_enc_ref,
                  w_head_ref, b_head_ref,
                  expmask_ref, out_ref):
    # --- backbone stub (stands in for the PaliGemma2 hidden state) -----------
    # TODO(synk): PaliGemmaForConditionalGeneration + PaliGemmaProcessor have
    # no Pallas equivalent; this deterministic tanh-linear stub replaces them.
    # bf16 x bf16 MXU matmul, f32 accumulate; result is truncated to bf16
    # (backbone runs in bf16; module then does `x = x.to(torch.float32)`).
    hidden = jnp.tanh(jnp.dot(s_ref[...], w_stub_ref[...],
                              preferred_element_type=jnp.float32))
    h = hidden.astype(jnp.bfloat16).astype(jnp.float32)

    # --- self.linear + self.norm (RMSNorm, no affine) -------------------------
    x = jnp.dot(h, w_lin_ref[...],
                preferred_element_type=jnp.float32) + b_lin_ref[...]
    ms = jnp.mean(x * x, axis=-1, keepdims=True)
    x = x * jax.lax.rsqrt(ms + RMS_EPS)

    # --- fused value_enc || policy_enc: one matmul, one ReLU ------------------
    # enc[:, :HIDDEN_PAD]             = ReLU(x @ W_ve_pad + b_ve_pad)  (value_x)
    # enc[:, HIDDEN_PAD:2*HIDDEN_PAD] = ReLU(x @ W_pe_pad + b_pe_pad)  (policy_x)
    enc = jnp.maximum(
        jnp.dot(x, w_enc_ref[...], preferred_element_type=jnp.float32)
        + b_enc_ref[...], 0.0)

    # --- fused value_head | alpha_head | beta_head: one matmul ----------------
    # block-structured weight: vx-rows feed column 0 (value), px-rows feed
    # columns 1..3 (alpha logits) and 4..6 (beta logits); padded rows/cols = 0.
    logits = (jnp.dot(enc, w_head_ref[...], preferred_element_type=jnp.float32)
              + b_head_ref[...])
    # reference semantics: alpha = exp(logits)+1, beta = exp(logits)+1;
    # exp_mask is a precomputed constant selecting the alpha/beta columns.
    small = jnp.where(expmask_ref[...] > 0.5, jnp.exp(logits) + 1.0, logits)

    # --- single lane-dense [tb, 640] output slab: [x | enc | small] -----------
    out_ref[:, :REP_DIM] = x
    out_ref[:, REP_DIM:REP_DIM + 2 * HIDDEN_PAD] = enc
    out_ref[:, REP_DIM + 2 * HIDDEN_PAD:] = small


def fused_forward(s_flat, params, *, batch_tile=128):
    """Backbone stub + full PPO head in ONE batch-gridded pallas_call."""
    B, K = s_flat.shape

    # batch tile: multiple of 8 (f32 sublane); 128 rows per step once gridded.
    tb = min(batch_tile, _round_up(B, 8))
    Bp = _round_up(B, tb)
    s_pad = jnp.zeros((Bp, K), jnp.bfloat16).at[:B].set(
        s_flat.astype(jnp.bfloat16))

    # --- rough VMEM guard (weights resident + double-buffered batch blocks) --
    # TODO(synk): if s_flat_dim grows (real frames / long T), grid the stub
    # matmul over K with a VMEM accumulator instead of a full-K block.
    vmem_est = (
        K * 128 * 2                      # w_stub, lane-padded bf16
        + SEQ_HIDDEN_DIM * REP_DIM * 4   # w_lin
        + REP_DIM * 2 * HIDDEN_PAD * 4   # w_enc
        + 2 * HIDDEN_PAD * HEAD_PAD * 4  # w_head
        + 2 * (tb * K * 2)               # s tile, double-buffered
        + 2 * (tb * OUT_W * 4)           # out tile, double-buffered
        + 4 * 8 * 128 * 4)               # biases + mask (sublane-padded)
    assert vmem_est < 16 * 1024 * 1024, (
        "stub input too large for full-K VMEM block; grid over K")

    inputs = (
        s_pad, params["w_stub"],
        params["w_lin"], params["b_lin"],
        params["w_enc"], params["b_enc"],
        params["w_head"], params["b_head"],
        params["exp_mask"],
    )
    const = lambda shape: pl.BlockSpec(shape, lambda i: (0, 0))
    in_specs = [
        pl.BlockSpec((tb, K), lambda i: (i, 0)),          # s tile (per step)
        const((K, SEQ_HIDDEN_DIM)),                       # weights: resident
        const((SEQ_HIDDEN_DIM, REP_DIM)),
        const((1, REP_DIM)),
        const((REP_DIM, 2 * HIDDEN_PAD)),
        const((1, 2 * HIDDEN_PAD)),
        const((2 * HIDDEN_PAD, HEAD_PAD)),
        const((1, HEAD_PAD)),
        const((1, HEAD_PAD)),
    ]
    slab = pl.pallas_call(
        _fused_kernel,
        out_shape=jax.ShapeDtypeStruct((Bp, OUT_W), jnp.float32),
        grid=(Bp // tb,),
        in_specs=in_specs,
        out_specs=pl.BlockSpec((tb, OUT_W), lambda i: (i, 0)),
        compiler_params=pltpu.CompilerParams(
            dimension_semantics=("parallel",)),   # dual-TC sharding on v7x
    )(*inputs)

    x        = slab[:B, :REP_DIM]
    enc      = slab[:B, REP_DIM:REP_DIM + 2 * HIDDEN_PAD]
    small    = slab[:B, REP_DIM + 2 * HIDDEN_PAD:]
    value_x  = enc[:, :HIDDEN_DIM]
    policy_x = enc[:, HIDDEN_PAD:HIDDEN_PAD + HIDDEN_DIM]
    value    = small[:, 0:1]
    alpha    = small[:, 1:1 + ACTION_DIM]
    beta     = small[:, 1 + ACTION_DIM:1 + 2 * ACTION_DIM]
    return x, value_x, value, policy_x, alpha, beta


# ------------------------------ full forward ---------------------------------
def ppo_forward(r_seq, s_seq, a_seq, params, action=None, key=None):
    """JAX equivalent of PpoPaligemmaPolicyAndValue.forward."""
    del r_seq, a_seq  # only consumed by the (untranslated) backbone/generation
    B = s_seq.shape[0]
    s_flat = s_seq.reshape(B, -1).astype(jnp.float32)

    x, value_x, value, policy_x, alpha, beta = fused_forward(s_flat, params)

    # TODO(synk): Beta sampling + lgamma-based log_prob stay in plain JAX.
    if action is None:
        action = jax.random.beta(key, alpha, beta)
        # keep log(action) / log1p(-action) finite (f32 sampling can hit 0/1)
        action = jnp.clip(action, 1e-6, 1.0 - 1e-6)

    log_prob = ((alpha - 1.0) * jnp.log(action)
                + (beta - 1.0) * jnp.log1p(-action)
                + jax.lax.lgamma(alpha + beta)
                - jax.lax.lgamma(alpha) - jax.lax.lgamma(beta))
    a_logp = jnp.sum(log_prob, axis=-1)

    return {
        "action": action,
        "a_logp": a_logp,
        "value": value,
        "x": x,
        "value_x": value_x,
        "policy_x": policy_x,
        # extra diagnostic keys (not in the torch return dict):
        "alpha": alpha,
        "beta": beta,
    }


# ------------------------------ parameter init --------------------------------
def _linear_params(key, fan_in, fan_out):
    """Torch-style init: U(-1/sqrt(fan_in), 1/sqrt(fan_in)); W is [in, out]."""
    kw, kb = jax.random.split(key)
    bound = 1.0 / jnp.sqrt(jnp.float32(fan_in))
    w = jax.random.uniform(kw, (fan_in, fan_out), jnp.float32, -bound, bound)
    b = jax.random.uniform(kb, (1, fan_out), jnp.float32, -bound, bound)
    return w, b


def init_raw_params(key, s_flat_dim):
    keys = jax.random.split(key, 8)
    raw = {}
    raw["w_stub"] = (
        jax.random.normal(keys[0], (s_flat_dim, SEQ_HIDDEN_DIM), jnp.float32)
        / jnp.sqrt(jnp.float32(s_flat_dim)))
    raw["w_lin"], raw["b_lin"] = _linear_params(keys[1], SEQ_HIDDEN_DIM, REP_DIM)
    raw["w_ve"], raw["b_ve"] = _linear_params(keys[2], REP_DIM, HIDDEN_DIM)
    raw["w_vh"], raw["b_vh"] = _linear_params(keys[3], HIDDEN_DIM, 1)
    raw["w_pe"], raw["b_pe"] = _linear_params(keys[4], REP_DIM, HIDDEN_DIM)
    raw["w_a"], raw["b_a"] = _linear_params(keys[5], HIDDEN_DIM, ACTION_DIM)
    raw["w_b"], raw["b_b"] = _linear_params(keys[6], HIDDEN_DIM, ACTION_DIM)
    return raw


def prepare_fused_params(raw):
    """Builds fused / zero-padded weights so the kernel does 1 stub-matmul,
    1 enc-matmul and 1 head-matmul; padding rows/cols are zero => same math."""
    p = {
        # stub weight stored bf16: its f32 product is truncated to bf16 anyway.
        "w_stub": raw["w_stub"].astype(jnp.bfloat16),
        "w_lin": raw["w_lin"], "b_lin": raw["b_lin"],
    }

    # fused encoder weight: [REP_DIM, 2*HIDDEN_PAD] = [ W_ve | 0 | W_pe | 0 ]
    w_enc = jnp.zeros((REP_DIM, 2 * HIDDEN_PAD), jnp.float32)
    w_enc = w_enc.at[:, :HIDDEN_DIM].set(raw["w_ve"])
    w_enc = w_enc.at[:, HIDDEN_PAD:HIDDEN_PAD + HIDDEN_DIM].set(raw["w_pe"])
    b_enc = jnp.zeros((1, 2 * HIDDEN_PAD), jnp.float32)
    b_enc = b_enc.at[:, :HIDDEN_DIM].set(raw["b_ve"][0])
    b_enc = b_enc.at[:, HIDDEN_PAD:HIDDEN_PAD + HIDDEN_DIM].set(raw["b_pe"][0])
    p["w_enc"], p["b_enc"] = w_enc, b_enc

    # fused head weight: [2*HIDDEN_PAD, HEAD_PAD]
    #   rows   0..99   (vx) -> col 0          : value_head
    #   rows 128..227  (px) -> cols 1..3, 4..6: alpha_head, beta_head
    w_head = jnp.zeros((2 * HIDDEN_PAD, HEAD_PAD), jnp.float32)
    w_head = w_head.at[:HIDDEN_DIM, 0].set(raw["w_vh"][:, 0])
    w_head = w_head.at[HIDDEN_PAD:HIDDEN_PAD + HIDDEN_DIM,
                       1:1 + ACTION_DIM].set(raw["w_a"])
    w_head = w_head.at[HIDDEN_PAD:HIDDEN_PAD + HIDDEN_DIM,
                       1 + ACTION_DIM:1 + 2 * ACTION_DIM].set(raw["w_b"])
    b_head = jnp.zeros((1, HEAD_PAD), jnp.float32)
    b_head = b_head.at[0, 0].set(raw["b_vh"][0, 0])
    b_head = b_head.at[0, 1:1 + ACTION_DIM].set(raw["b_a"][0])
    b_head = b_head.at[0, 1 + ACTION_DIM:1 + 2 * ACTION_DIM].set(raw["b_b"][0])
    p["w_head"], p["b_head"] = w_head, b_head

    # constant select mask for the alpha/beta exp columns (precomputed once).
    exp_mask = jnp.zeros((1, HEAD_PAD), jnp.float32)
    exp_mask = exp_mask.at[0, 1:1 + 2 * ACTION_DIM].set(1.0)
    p["exp_mask"] = exp_mask
    return p


# ---------------------------------- main --------------------------------------
if __name__ == "__main__":
    root = jax.random.PRNGKey(0)
    k_r, k_s, k_a, k_p, k_sample = jax.random.split(root, 5)

    B, T, C, H, W = 2, 2, 3, 16, 16          # small image sequence (NCHW per frame)
    r_seq = jax.random.normal(k_r, (B, T), jnp.float32)
    s_seq = jax.random.uniform(k_s, (B, T, C, H, W), jnp.float32)
    a_seq = jax.random.uniform(k_a, (B, T, ACTION_DIM), jnp.float32)

    raw_params = init_raw_params(k_p, T * C * H * W)
    params = prepare_fused_params(raw_params)

    out = ppo_forward(r_seq, s_seq, a_seq, params, action=None, key=k_sample)
    out = jax.block_until_ready(out)

    assert out["action"].shape == (B, ACTION_DIM)
    assert out["a_logp"].shape == (B,)
    assert out["value"].shape == (B, 1)
    assert out["x"].shape == (B, REP_DIM)
    assert out["value_x"].shape == (B, HIDDEN_DIM)
    assert out["policy_x"].shape == (B, HIDDEN_DIM)
    assert bool(jnp.all(jnp.isfinite(out["a_logp"])))
    assert bool(jnp.all(jnp.isfinite(out["value"])))
    assert bool(jnp.all(out["alpha"] > 1.0))
    assert bool(jnp.all(out["beta"] > 1.0))
    assert bool(jnp.all((out["action"] > 0.0) & (out["action"] < 1.0)))

    print("KERNEL_OK")
</pallas_src>

<mosaic_0001>
module attributes {stable_mosaic.version = 11 : i64} {
  func.func @_fused_kernel(%arg0: i32, %arg1: memref<8x1536xbf16, #tpu.memory_space<vmem>>, %arg2: memref<1536x32xbf16, #tpu.memory_space<vmem>>, %arg3: memref<32x256xf32, #tpu.memory_space<vmem>>, %arg4: memref<1x256xf32, #tpu.memory_space<vmem>>, %arg5: memref<256x256xf32, #tpu.memory_space<vmem>>, %arg6: memref<1x256xf32, #tpu.memory_space<vmem>>, %arg7: memref<256x128xf32, #tpu.memory_space<vmem>>, %arg8: memref<1x128xf32, #tpu.memory_space<vmem>>, %arg9: memref<1x128xf32, #tpu.memory_space<vmem>>, %arg10: memref<8x640xf32, #tpu.memory_space<vmem>>) attributes {dimension_semantics = [#tpu.dimension_semantics<parallel>], iteration_bounds = array<i64: 1>, scalar_prefetch = 0 : i64, scratch_operands = 0 : i64, tpu.core_type = #tpu.core_type<tc>, window_params = [{transform_indices = @transform_0, window_bounds = array<i64: 8, 1536>}, {pipeline_mode = #tpu.pipeline_mode<synchronous>, transform_indices = @transform_1, window_bounds = array<i64: 1536, 32>}, {pipeline_mode = #tpu.pipeline_mode<synchronous>, transform_indices = @transform_2, window_bounds = array<i64: 32, 256>}, {pipeline_mode = #tpu.pipeline_mode<synchronous>, transform_indices = @transform_3, window_bounds = array<i64: 1, 256>}, {pipeline_mode = #tpu.pipeline_mode<synchronous>, transform_indices = @transform_4, window_bounds = array<i64: 256, 256>}, {pipeline_mode = #tpu.pipeline_mode<synchronous>, transform_indices = @transform_5, window_bounds = array<i64: 1, 256>}, {pipeline_mode = #tpu.pipeline_mode<synchronous>, transform_indices = @transform_6, window_bounds = array<i64: 256, 128>}, {pipeline_mode = #tpu.pipeline_mode<synchronous>, transform_indices = @transform_7, window_bounds = array<i64: 1, 128>}, {pipeline_mode = #tpu.pipeline_mode<synchronous>, transform_indices = @transform_8, window_bounds = array<i64: 1, 128>}, {transform_indices = @transform_9, window_bounds = array<i64: 8, 640>}]} {
    %c0 = arith.constant 0 : index
    %c0_0 = arith.constant 0 : index
    %0 = vector.load %arg1[%c0, %c0_0] : memref<8x1536xbf16, #tpu.memory_space<vmem>>, vector<8x1536xbf16>
    %c0_1 = arith.constant 0 : index
    %c0_2 = arith.constant 0 : index
    %1 = vector.load %arg2[%c0_1, %c0_2] : memref<1536x32xbf16, #tpu.memory_space<vmem>>, vector<1536x32xbf16>
    %cst = arith.constant dense<0.000000e+00> : vector<8x32xf32>
    %2 = tpu.matmul %0, %1, %cst {dimension_numbers = #tpu.dot_dimension_numbers<[1], [0], [0], [1], [0, 0, 1, 1], [], []>} : vector<8x1536xbf16>, vector<1536x32xbf16>, vector<8x32xf32> -> vector<8x32xf32>
    %3 = math.tanh %2 : vector<8x32xf32>
    %4 = arith.truncf %3 : vector<8x32xf32> to vector<8x32xbf16>
    %5 = arith.extf %4 : vector<8x32xbf16> to vector<8x32xf32>
    %c0_3 = arith.constant 0 : index
    %c0_4 = arith.constant 0 : index
    %6 = vector.load %arg3[%c0_3, %c0_4] : memref<32x256xf32, #tpu.memory_space<vmem>>, vector<32x256xf32>
    %cst_5 = arith.constant dense<0.000000e+00> : vector<8x256xf32>
    %7 = tpu.matmul %5, %6, %cst_5 {dimension_numbers = #tpu.dot_dimension_numbers<[1], [0], [0], [1], [0, 0, 1, 1], [], []>} : vector<8x32xf32>, vector<32x256xf32>, vector<8x256xf32> -> vector<8x256xf32>
    %c0_6 = arith.constant 0 : index
    %c0_7 = arith.constant 0 : index
    %8 = vector.load %arg4[%c0_6, %c0_7] : memref<1x256xf32, #tpu.memory_space<vmem>>, vector<1x256xf32>
    %9 = vector.broadcast %8 : vector<1x256xf32> to vector<8x256xf32>
    %10 = arith.addf %7, %9 : vector<8x256xf32>
    %11 = arith.mulf %10, %10 : vector<8x256xf32>
    %cst_8 = arith.constant dense<0.000000e+00> : vector<8xf32>
    %12 = vector.multi_reduction <add>, %11, %cst_8 [1] : vector<8x256xf32> to vector<8xf32>
    %13 = vector.shape_cast %12 : vector<8xf32> to vector<8x1xf32>
    %cst_9 = arith.constant 2.560000e+02 : f32
    %14 = vector.broadcast %cst_9 : f32 to vector<8x1xf32>
    %15 = arith.divf %13, %14 : vector<8x1xf32>
    %cst_10 = arith.constant 1.1920929E-7 : f32
    %16 = vector.broadcast %cst_10 : f32 to vector<8x1xf32>
    %17 = arith.addf %15, %16 : vector<8x1xf32>
    %18 = math.rsqrt %17 : vector<8x1xf32>
    %19 = vector.broadcast %18 : vector<8x1xf32> to vector<8x256xf32>
    %20 = arith.mulf %10, %19 : vector<8x256xf32>
    %c0_11 = arith.constant 0 : index
    %c0_12 = arith.constant 0 : index
    %21 = vector.load %arg5[%c0_11, %c0_12] : memref<256x256xf32, #tpu.memory_space<vmem>>, vector<256x256xf32>
    %cst_13 = arith.constant dense<0.000000e+00> : vector<8x256xf32>
    %22 = tpu.matmul %20, %21, %cst_13 {dimension_numbers = #tpu.dot_dimension_numbers<[1], [0], [0], [1], [0, 0, 1, 1], [], []>} : vector<8x256xf32>, vector<256x256xf32>, vector<8x256xf32> -> vector<8x256xf32>
    %c0_14 = arith.constant 0 : index
    %c0_15 = arith.constant 0 : index
    %23 = vector.load %arg6[%c0_14, %c0_15] : memref<1x256xf32, #tpu.memory_space<vmem>>, vector<1x256xf32>
    %24 = vector.broadcast %23 : vector<1x256xf32> to vector<8x256xf32>
    %25 = arith.addf %22, %24 : vector<8x256xf32>
    %cst_16 = arith.constant 0.000000e+00 : f32
    %26 = vector.broadcast %cst_16 : f32 to vector<8x256xf32>
    %27 = arith.maximumf %25, %26 : vector<8x256xf32>
    %c0_17 = arith.constant 0 : index
    %c0_18 = arith.constant 0 : index
    %28 = vector.load %arg7[%c0_17, %c0_18] : memref<256x128xf32, #tpu.memory_space<vmem>>, vector<256x128xf32>
    %cst_19 = arith.constant dense<0.000000e+00> : vector<8x128xf32>
    %29 = tpu.matmul %27, %28, %cst_19 {dimension_numbers = #tpu.dot_dimension_numbers<[1], [0], [0], [1], [0, 0, 1, 1], [], []>} : vector<8x256xf32>, vector<256x128xf32>, vector<8x128xf32> -> vector<8x128xf32>
    %c0_20 = arith.constant 0 : index
    %c0_21 = arith.constant 0 : index
    %30 = vector.load %arg8[%c0_20, %c0_21] : memref<1x128xf32, #tpu.memory_space<vmem>>, vector<1x128xf32>
    %31 = vector.broadcast %30 : vector<1x128xf32> to vector<8x128xf32>
    %32 = arith.addf %29, %31 : vector<8x128xf32>
    %c0_22 = arith.constant 0 : index
    %c0_23 = arith.constant 0 : index
    %33 = vector.load %arg9[%c0_22, %c0_23] : memref<1x128xf32, #tpu.memory_space<vmem>>, vector<1x128xf32>
    %cst_24 = arith.constant 5.000000e-01 : f32
    %34 = vector.broadcast %cst_24 : f32 to vector<1x128xf32>
    %35 = arith.cmpf ogt, %33, %34 : vector<1x128xf32>
    %36 = math.exp %32 : vector<8x128xf32>
    %cst_25 = arith.constant 1.000000e+00 : f32
    %37 = vector.broadcast %cst_25 : f32 to vector<8x128xf32>
    %38 = arith.addf %36, %37 : vector<8x128xf32>
    %39 = vector.shape_cast %35 : vector<1x128xi1> to vector<1x128xi1>
    %40 = vector.broadcast %39 : vector<1x128xi1> to vector<8x128xi1>
    %41 = arith.select %40, %38, %32 : vector<8x128xi1>, vector<8x128xf32>
    %c0_26 = arith.constant 0 : index
    %c0_27 = arith.constant 0 : index
    %42 = vector.load %arg10[%c0_26, %c0_27] : memref<8x640xf32, #tpu.memory_space<vmem>>, vector<8x256xf32>
    tpu.vector_store %arg10[%c0_26, %c0_27], %20 {strides = array<i32>} : memref<8x640xf32, #tpu.memory_space<vmem>>, vector<8x256xf32>,
    %c0_28 = arith.constant 0 : index
    %c256 = arith.constant 256 : index
    %43 = vector.load %arg10[%c0_28, %c256] : memref<8x640xf32, #tpu.memory_space<vmem>>, vector<8x256xf32>
    tpu.vector_store %arg10[%c0_28, %c256], %27 {strides = array<i32>} : memref<8x640xf32, #tpu.memory_space<vmem>>, vector<8x256xf32>,
    %c0_29 = arith.constant 0 : index
    %c512 = arith.constant 512 : index
    %44 = vector.load %arg10[%c0_29, %c512] : memref<8x640xf32, #tpu.memory_space<vmem>>, vector<8x128xf32>
    tpu.vector_store %arg10[%c0_29, %c512], %41 {strides = array<i32>} : memref<8x640xf32, #tpu.memory_space<vmem>>, vector<8x128xf32>,
    return
  }
  func.func @transform_0(%arg0: i32) -> (i32, i32) {
    %c0_i32 = arith.constant 0 : i32
    %c0_i32_0 = arith.constant 0 : i32
    return %arg0, %c0_i32 : i32, i32
  }
  func.func @transform_1(%arg0: i32) -> (i32, i32) {
    %c0_i32 = arith.constant 0 : i32
    %c0_i32_0 = arith.constant 0 : i32
    %c0_i32_1 = arith.constant 0 : i32
    return %c0_i32, %c0_i32_0 : i32, i32
  }
  func.func @transform_2(%arg0: i32) -> (i32, i32) {
    %c0_i32 = arith.constant 0 : i32
    %c0_i32_0 = arith.constant 0 : i32
    %c0_i32_1 = arith.constant 0 : i32
    return %c0_i32, %c0_i32_0 : i32, i32
  }
  func.func @transform_3(%arg0: i32) -> (i32, i32) {
    %c0_i32 = arith.constant 0 : i32
    %c0_i32_0 = arith.constant 0 : i32
    %c0_i32_1 = arith.constant 0 : i32
    return %c0_i32, %c0_i32_0 : i32, i32
  }
  func.func @transform_4(%arg0: i32) -> (i32, i32) {
    %c0_i32 = arith.constant 0 : i32
    %c0_i32_0 = arith.constant 0 : i32
    %c0_i32_1 = arith.constant 0 : i32
    return %c0_i32, %c0_i32_0 : i32, i32
  }
  func.func @transform_5(%arg0: i32) -> (i32, i32) {
    %c0_i32 = arith.constant 0 : i32
    %c0_i32_0 = arith.constant 0 : i32
    %c0_i32_1 = arith.constant 0 : i32
    return %c0_i32, %c0_i32_0 : i32, i32
  }
  func.func @transform_6(%arg0: i32) -> (i32, i32) {
    %c0_i32 = arith.constant 0 : i32
    %c0_i32_0 = arith.constant 0 : i32
    %c0_i32_1 = arith.constant 0 : i32
    return %c0_i32, %c0_i32_0 : i32, i32
  }
  func.func @transform_7(%arg0: i32) -> (i32, i32) {
    %c0_i32 = arith.constant 0 : i32
    %c0_i32_0 = arith.constant 0 : i32
    %c0_i32_1 = arith.constant 0 : i32
    return %c0_i32, %c0_i32_0 : i32, i32
  }
  func.func @transform_8(%arg0: i32) -> (i32, i32) {
    %c0_i32 = arith.constant 0 : i32
    %c0_i32_0 = arith.constant 0 : i32
    %c0_i32_1 = arith.constant 0 : i32
    return %c0_i32, %c0_i32_0 : i32, i32
  }
  func.func @transform_9(%arg0: i32) -> (i32, i32) {
    %c0_i32 = arith.constant 0 : i32
    %c0_i32_0 = arith.constant 0 : i32
    return %arg0, %c0_i32 : i32, i32
  }
}

</mosaic_0001>

<llo_original>
// kernel: tpu_custom_call.1
$region0: #{tpu_custom_call.1}
  #allocation0 [shape = 'u32[]', space=smem, size = 0x4, offset = 0x4, fixed_abs, tag = 'smem constant byte address 0x4 - core index']
  #allocation1 [shape = 'u32[72,128]{1,0:T(1,128)}', space=vmem, size = 0x9000, scoped, tag = 'internal scratch']
  %s0 = inlined_call_operand.vmem [shape: bf16[8,1536], index: 0, kind: input, shape index: {}]
  %s1 = inlined_call_operand.vmem [shape: bf16[1536,32], index: 1, kind: input, shape index: {}]
  %s2 = inlined_call_operand.vmem [shape: f32[32,256], index: 2, kind: input, shape index: {}]
  %s3 = inlined_call_operand.vmem [shape: f32[1,256], index: 3, kind: input, shape index: {}]
  %s4 = inlined_call_operand.vmem [shape: f32[256,256], index: 4, kind: input, shape index: {}]
  %s5 = inlined_call_operand.vmem [shape: f32[1,256], index: 5, kind: input, shape index: {}]
  %s6 = inlined_call_operand.vmem [shape: f32[256,128], index: 6, kind: input, shape index: {}]
  %s7 = inlined_call_operand.vmem [shape: f32[1,128], index: 7, kind: input, shape index: {}]
  %s8 = inlined_call_operand.vmem [shape: f32[1,128], index: 8, kind: input, shape index: {}]
  %s9 = inlined_call_operand.hbm [shape: f32[8,640], index: 9, kind: output, shape index: {}]
  %s10 = sld [smem:[#allocation0]]
  $region46: #{tpu_custom_call.1} parent=0
    _
  %s12 = ssub.s32 1, %s10
  %s13 = scalar_select 0, %s12, %s10
  $region1: #{tpu_custom_call.1} parent=0
    #allocation2 [shape = 'u8[20480]{0}', space=vmem, size = 0x5000, scoped, tag = 'output window, operand 0, single buffered']
    #allocation3 [shape = 's32[1]{0}', space=sflag, size = 0x4, scoped, tag = 'scoped memory for tpu_custom_call.1']
    %14 = vsyncpa [#allocation3], 0
    // Predicated region
    $region2: #{tpu_custom_call.1} parent=1 // pred_check
      _
    $region3: #{tpu_custom_call.1} parent=1 // pred_check_branch
      %16 = sbr.rel (0) target = $region5
    $region4: #{tpu_custom_call.1} parent=1 // pred_region
      _
    $region5: #{tpu_custom_call.1} parent=1 // pred_fallthru
      _
    // Predicated region
    $region6: #{tpu_custom_call.1} parent=1 // pred_check
      _
    $region7: #{tpu_custom_call.1} parent=1 // pred_check_branch
      %18 = sbr.rel (0) target = $region9
    $region8: #{tpu_custom_call.1} parent=1 // pred_region
      _
    $region9: #{tpu_custom_call.1} parent=1 // pred_fallthru
      _
    // Predicated region
    $region10: #{tpu_custom_call.1} parent=1 // pred_check
      _
    $region11: #{tpu_custom_call.1} parent=1 // pred_check_branch
      %20 = sbr.rel (0) target = $region13
    $region12: #{tpu_custom_call.1} parent=1 // pred_region
      _
    $region13: #{tpu_custom_call.1} parent=1 // pred_fallthru
      _
    // Predicated region
    $region14: #{tpu_custom_call.1} parent=1 // pred_check
      _
    $region15: #{tpu_custom_call.1} parent=1 // pred_check_branch
      %22 = sbr.rel (0) target = $region17
    $region16: #{tpu_custom_call.1} parent=1 // pred_region
      _
    $region17: #{tpu_custom_call.1} parent=1 // pred_fallthru
      _
    // Predicated region
    $region18: #{tpu_custom_call.1} parent=1 // pred_check
      _
    $region19: #{tpu_custom_call.1} parent=1 // pred_check_branch
      %24 = sbr.rel (0) target = $region21
    $region20: #{tpu_custom_call.1} parent=1 // pred_region
      _
    $region21: #{tpu_custom_call.1} parent=1 // pred_fallthru
      _
    // Predicated region
    $region22: #{tpu_custom_call.1} parent=1 // pred_check
      _
    $region23: #{tpu_custom_call.1} parent=1 // pred_check_branch
      %26 = sbr.rel (0) target = $region25
    $region24: #{tpu_custom_call.1} parent=1 // pred_region
      _
    $region25: #{tpu_custom_call.1} parent=1 // pred_fallthru
      _
    // Predicated region
    $region26: #{tpu_custom_call.1} parent=1 // pred_check
      _
    $region27: #{tpu_custom_call.1} parent=1 // pred_check_branch
      %28 = sbr.rel (0) target = $region29
    $region28: #{tpu_custom_call.1} parent=1 // pred_region
      _
    $region29: #{tpu_custom_call.1} parent=1 // pred_fallthru
      _
    // Predicated region
    $region30: #{tpu_custom_call.1} parent=1 // pred_check
      _
    $region31: #{tpu_custom_call.1} parent=1 // pred_check_branch
      %30 = sbr.rel (0) target = $region33
    $region32: #{tpu_custom_call.1} parent=1 // pred_region
      _
    $region33: #{tpu_custom_call.1} parent=1 // pred_fallthru
      _
    // Predicated region
    $region34: #{tpu_custom_call.1} parent=1 // pred_check
      _
    $region35: #{tpu_custom_call.1} parent=1 // pred_check_branch
      %32 = sbr.rel (0) target = $region37
    $region36: #{tpu_custom_call.1} parent=1 // pred_region
      _
    $region37: #{tpu_custom_call.1} parent=1 // pred_fallthru
      _
    %v33 = vld [vmem:[%s0] sm:$0xff]
    %v34 = vld [vmem:[%s0 + $0x8] sm:$0xff]
    %v35 = vld [vmem:[%s0 + $0x10] sm:$0xff]
    %v36 = vld [vmem:[%s0 + $0x18] sm:$0xff]
    %v37 = vld [vmem:[%s0 + $0x20] sm:$0xff]
    %v38 = vld [vmem:[%s0 + $0x28] sm:$0xff]
    %v39 = vld [vmem:[%s1] sm:$0xf]
    %v40 = vld [vmem:[%s1 + $0x4] sm:$0xf]
    %v41 = vld [vmem:[%s1 + $0x8] sm:$0xf]
    %v42 = vld [vmem:[%s1 + $0xc] sm:$0xf]
    %v43 = vld [vmem:[%s1 + $0x10] sm:$0xf]
    %v44 = vld [vmem:[%s1 + $0x14] sm:$0xf]
    %v45 = vld [vmem:[%s1 + $0x18] sm:$0xf]
    %v46 = vld [vmem:[%s1 + $0x1c] sm:$0xf]
    %v47 = vld [vmem:[%s1 + $0x20] sm:$0xf]
    %v48 = vld [vmem:[%s1 + $0x24] sm:$0xf]
    %v49 = vld [vmem:[%s1 + $0x28] sm:$0xf]
    %v50 = vld [vmem:[%s1 + $0x2c] sm:$0xf]
    %v51 = vld [vmem:[%s1 + $0x30] sm:$0xf]
    %v52 = vld [vmem:[%s1 + $0x34] sm:$0xf]
    %v53 = vld [vmem:[%s1 + $0x38] sm:$0xf]
    %v54 = vld [vmem:[%s1 + $0x3c] sm:$0xf]
    %v55 = vld [vmem:[%s1 + $0x40] sm:$0xf]
    %v56 = vld [vmem:[%s1 + $0x44] sm:$0xf]
    %v57 = vld [vmem:[%s1 + $0x48] sm:$0xf]
    %v58 = vld [vmem:[%s1 + $0x4c] sm:$0xf]
    %v59 = vld [vmem:[%s1 + $0x50] sm:$0xf]
    %v60 = vld [vmem:[%s1 + $0x54] sm:$0xf]
    %v61 = vld [vmem:[%s1 + $0x58] sm:$0xf]
    %v62 = vld [vmem:[%s1 + $0x5c] sm:$0xf]
    %v63 = vld [vmem:[%s1 + $0x60] sm:$0xf]
    %v64 = vld [vmem:[%s1 + $0x64] sm:$0xf]
    %v65 = vld [vmem:[%s1 + $0x68] sm:$0xf]
    %v66 = vld [vmem:[%s1 + $0x6c] sm:$0xf]
    %v67 = vld [vmem:[%s1 + $0x70] sm:$0xf]
    %v68 = vld [vmem:[%s1 + $0x74] sm:$0xf]
    %v69 = vld [vmem:[%s1 + $0x78] sm:$0xf]
    %v70 = vld [vmem:[%s1 + $0x7c] sm:$0xf]
    %v71 = vld [vmem:[%s1 + $0x80] sm:$0xf]
    %v72 = vld [vmem:[%s1 + $0x84] sm:$0xf]
    %v73 = vld [vmem:[%s1 + $0x88] sm:$0xf]
    %v74 = vld [vmem:[%s1 + $0x8c] sm:$0xf]
    %v75 = vld [vmem:[%s1 + $0x90] sm:$0xf]
    %v76 = vld [vmem:[%s1 + $0x94] sm:$0xf]
    %v77 = vld [vmem:[%s1 + $0x98] sm:$0xf]
    %v78 = vld [vmem:[%s1 + $0x9c] sm:$0xf]
    %v79 = vld [vmem:[%s1 + $0xa0] sm:$0xf]
    %v80 = vld [vmem:[%s1 + $0xa4] sm:$0xf]
    %v81 = vld [vmem:[%s1 + $0xa8] sm:$0xf]
    %v82 = vld [vmem:[%s1 + $0xac] sm:$0xf]
    %v83 = vld [vmem:[%s1 + $0xb0] sm:$0xf]
    %v84 = vld [vmem:[%s1 + $0xb4] sm:$0xf]
    %v85 = vld [vmem:[%s1 + $0xb8] sm:$0xf]
    %v86 = vld [vmem:[%s1 + $0xbc] sm:$0xf]
    %v87 = vld [vmem:[%s1 + $0xc0] sm:$0xf]
    %v88 = vld [vmem:[%s1 + $0xc4] sm:$0xf]
    %v89 = vld [vmem:[%s1 + $0xc8] sm:$0xf]
    %v90 = vld [vmem:[%s1 + $0xcc] sm:$0xf]
    %v91 = vld [vmem:[%s1 + $0xd0] sm:$0xf]
    %v92 = vld [vmem:[%s1 + $0xd4] sm:$0xf]
    %v93 = vld [vmem:[%s1 + $0xd8] sm:$0xf]
    %v94 = vld [vmem:[%s1 + $0xdc] sm:$0xf]
    %v95 = vld [vmem:[%s1 + $0xe0] sm:$0xf]
    %v96 = vld [vmem:[%s1 + $0xe4] sm:$0xf]
    %v97 = vld [vmem:[%s1 + $0xe8] sm:$0xf]
    %v98 = vld [vmem:[%s1 + $0xec] sm:$0xf]
    %v99 = vld [vmem:[%s1 + $0xf0] sm:$0xf]
    %v100 = vld [vmem:[%s1 + $0xf4] sm:$0xf]
    %v101 = vld [vmem:[%s1 + $0xf8] sm:$0xf]
    %v102 = vld [vmem:[%s1 + $0xfc] sm:$0xf]
    %v103 = vld [vmem:[%s1 + $0x100] sm:$0xf]
    %v104 = vld [vmem:[%s1 + $0x104] sm:$0xf]
    %v105 = vld [vmem:[%s1 + $0x108] sm:$0xf]
    %v106 = vld [vmem:[%s1 + $0x10c] sm:$0xf]
    %v107 = vld [vmem:[%s1 + $0x110] sm:$0xf]
    %v108 = vld [vmem:[%s1 + $0x114] sm:$0xf]
    %v109 = vld [vmem:[%s1 + $0x118] sm:$0xf]
    %v110 = vld [vmem:[%s1 + $0x11c] sm:$0xf]
    %v111 = vld [vmem:[%s1 + $0x120] sm:$0xf]
    %v112 = vld [vmem:[%s1 + $0x124] sm:$0xf]
    %v113 = vld [vmem:[%s1 + $0x128] sm:$0xf]
    %v114 = vld [vmem:[%s1 + $0x12c] sm:$0xf]
    %v115 = vld [vmem:[%s1 + $0x130] sm:$0xf]
    %v116 = vld [vmem:[%s1 + $0x134] sm:$0xf]
    %v117 = vld [vmem:[%s1 + $0x138] sm:$0xf]
    %v118 = vld [vmem:[%s1 + $0x13c] sm:$0xf]
    %v119 = vld [vmem:[%s1 + $0x140] sm:$0xf]
    %v120 = vld [vmem:[%s1 + $0x144] sm:$0xf]
    %v121 = vld [vmem:[%s1 + $0x148] sm:$0xf]
    %v122 = vld [vmem:[%s1 + $0x14c] sm:$0xf]
    %v123 = vld [vmem:[%s1 + $0x150] sm:$0xf]
    %v124 = vld [vmem:[%s1 + $0x154] sm:$0xf]
    %v125 = vld [vmem:[%s1 + $0x158] sm:$0xf]
    %v126 = vld [vmem:[%s1 + $0x15c] sm:$0xf]
    %v127 = vld [vmem:[%s1 + $0x160] sm:$0xf]
    %v128 = vld [vmem:[%s1 + $0x164] sm:$0xf]
    %v129 = vld [vmem:[%s1 + $0x168] sm:$0xf]
    %v130 = vld [vmem:[%s1 + $0x16c] sm:$0xf]
    %v131 = vld [vmem:[%s1 + $0x170] sm:$0xf]
    %v132 = vld [vmem:[%s1 + $0x174] sm:$0xf]
    %v133 = vld [vmem:[%s1 + $0x178] sm:$0xf]
    %v134 = vld [vmem:[%s1 + $0x17c] sm:$0xf]
    %v135 = vld [vmem:[%s1 + $0x180] sm:$0xf]
    %v136 = vld [vmem:[%s1 + $0x184] sm:$0xf]
    %v137 = vld [vmem:[%s1 + $0x188] sm:$0xf]
    %v138 = vld [vmem:[%s1 + $0x18c] sm:$0xf]
    %v139 = vld [vmem:[%s1 + $0x190] sm:$0xf]
    %v140 = vld [vmem:[%s1 + $0x194] sm:$0xf]
    %v141 = vld [vmem:[%s1 + $0x198] sm:$0xf]
    %v142 = vld [vmem:[%s1 + $0x19c] sm:$0xf]
    %v143 = vld [vmem:[%s1 + $0x1a0] sm:$0xf]
    %v144 = vld [vmem:[%s1 + $0x1a4] sm:$0xf]
    %v145 = vld [vmem:[%s1 + $0x1a8] sm:$0xf]
    %v146 = vld [vmem:[%s1 + $0x1ac] sm:$0xf]
    %v147 = vld [vmem:[%s1 + $0x1b0] sm:$0xf]
    %v148 = vld [vmem:[%s1 + $0x1b4] sm:$0xf]
    %v149 = vld [vmem:[%s1 + $0x1b8] sm:$0xf]
    %v150 = vld [vmem:[%s1 + $0x1bc] sm:$0xf]
    %v151 = vld [vmem:[%s1 + $0x1c0] sm:$0xf]
    %v152 = vld [vmem:[%s1 + $0x1c4] sm:$0xf]
    %v153 = vld [vmem:[%s1 + $0x1c8] sm:$0xf]
    %v154 = vld [vmem:[%s1 + $0x1cc] sm:$0xf]
    %v155 = vld [vmem:[%s1 + $0x1d0] sm:$0xf]
    %v156 = vld [vmem:[%s1 + $0x1d4] sm:$0xf]
    %v157 = vld [vmem:[%s1 + $0x1d8] sm:$0xf]
    %v158 = vld [vmem:[%s1 + $0x1dc] sm:$0xf]
    %v159 = vld [vmem:[%s1 + $0x1e0] sm:$0xf]
    %v160 = vld [vmem:[%s1 + $0x1e4] sm:$0xf]
    %v161 = vld [vmem:[%s1 + $0x1e8] sm:$0xf]
    %v162 = vld [vmem:[%s1 + $0x1ec] sm:$0xf]
    %v163 = vld [vmem:[%s1 + $0x1f0] sm:$0xf]
    %v164 = vld [vmem:[%s1 + $0x1f4] sm:$0xf]
    %v165 = vld [vmem:[%s1 + $0x1f8] sm:$0xf]
    %v166 = vld [vmem:[%s1 + $0x1fc] sm:$0xf]
    %v167 = vld [vmem:[%s1 + $0x200] sm:$0xf]
    %v168 = vld [vmem:[%s1 + $0x204] sm:$0xf]
    %v169 = vld [vmem:[%s1 + $0x208] sm:$0xf]
    %v170 = vld [vmem:[%s1 + $0x20c] sm:$0xf]
    %v171 = vld [vmem:[%s1 + $0x210] sm:$0xf]
    %v172 = vld [vmem:[%s1 + $0x214] sm:$0xf]
    %v173 = vld [vmem:[%s1 + $0x218] sm:$0xf]
    %v174 = vld [vmem:[%s1 + $0x21c] sm:$0xf]
    %v175 = vld [vmem:[%s1 + $0x220] sm:$0xf]
    %v176 = vld [vmem:[%s1 + $0x224] sm:$0xf]
    %v177 = vld [vmem:[%s1 + $0x228] sm:$0xf]
    %v178 = vld [vmem:[%s1 + $0x22c] sm:$0xf]
    %v179 = vld [vmem:[%s1 + $0x230] sm:$0xf]
    %v180 = vld [vmem:[%s1 + $0x234] sm:$0xf]
    %v181 = vld [vmem:[%s1 + $0x238] sm:$0xf]
    %v182 = vld [vmem:[%s1 + $0x23c] sm:$0xf]
    %v183 = vld [vmem:[%s1 + $0x240] sm:$0xf]
    %v184 = vld [vmem:[%s1 + $0x244] sm:$0xf]
    %v185 = vld [vmem:[%s1 + $0x248] sm:$0xf]
    %v186 = vld [vmem:[%s1 + $0x24c] sm:$0xf]
    %v187 = vld [vmem:[%s1 + $0x250] sm:$0xf]
    %v188 = vld [vmem:[%s1 + $0x254] sm:$0xf]
    %v189 = vld [vmem:[%s1 + $0x258] sm:$0xf]
    %v190 = vld [vmem:[%s1 + $0x25c] sm:$0xf]
    %v191 = vld [vmem:[%s1 + $0x260] sm:$0xf]
    %v192 = vld [vmem:[%s1 + $0x264] sm:$0xf]
    %v193 = vld [vmem:[%s1 + $0x268] sm:$0xf]
    %v194 = vld [vmem:[%s1 + $0x26c] sm:$0xf]
    %v195 = vld [vmem:[%s1 + $0x270] sm:$0xf]
    %v196 = vld [vmem:[%s1 + $0x274] sm:$0xf]
    %v197 = vld [vmem:[%s1 + $0x278] sm:$0xf]
    %v198 = vld [vmem:[%s1 + $0x27c] sm:$0xf]
    %v199 = vld [vmem:[%s1 + $0x280] sm:$0xf]
    %v200 = vld [vmem:[%s1 + $0x284] sm:$0xf]
    %v201 = vld [vmem:[%s1 + $0x288] sm:$0xf]
    %v202 = vld [vmem:[%s1 + $0x28c] sm:$0xf]
    %v203 = vld [vmem:[%s1 + $0x290] sm:$0xf]
    %v204 = vld [vmem:[%s1 + $0x294] sm:$0xf]
    %v205 = vld [vmem:[%s1 + $0x298] sm:$0xf]
    %v206 = vld [vmem:[%s1 + $0x29c] sm:$0xf]
    %v207 = vld [vmem:[%s1 + $0x2a0] sm:$0xf]
    %v208 = vld [vmem:[%s1 + $0x2a4] sm:$0xf]
    %v209 = vld [vmem:[%s1 + $0x2a8] sm:$0xf]
    %v210 = vld [vmem:[%s1 + $0x2ac] sm:$0xf]
    %v211 = vld [vmem:[%s1 + $0x2b0] sm:$0xf]
    %v212 = vld [vmem:[%s1 + $0x2b4] sm:$0xf]
    %v213 = vld [vmem:[%s1 + $0x2b8] sm:$0xf]
    %v214 = vld [vmem:[%s1 + $0x2bc] sm:$0xf]
    %v215 = vld [vmem:[%s1 + $0x2c0] sm:$0xf]
    %v216 = vld [vmem:[%s1 + $0x2c4] sm:$0xf]
    %v217 = vld [vmem:[%s1 + $0x2c8] sm:$0xf]
    %v218 = vld [vmem:[%s1 + $0x2cc] sm:$0xf]
    %v219 = vld [vmem:[%s1 + $0x2d0] sm:$0xf]
    %v220 = vld [vmem:[%s1 + $0x2d4] sm:$0xf]
    %v221 = vld [vmem:[%s1 + $0x2d8] sm:$0xf]
    %v222 = vld [vmem:[%s1 + $0x2dc] sm:$0xf]
    %v223 = vld [vmem:[%s1 + $0x2e0] sm:$0xf]
    %v224 = vld [vmem:[%s1 + $0x2e4] sm:$0xf]
    %v225 = vld [vmem:[%s1 + $0x2e8] sm:$0xf]
    %v226 = vld [vmem:[%s1 + $0x2ec] sm:$0xf]
    %v227 = vld [vmem:[%s1 + $0x2f0] sm:$0xf]
    %v228 = vld [vmem:[%s1 + $0x2f4] sm:$0xf]
    %v229 = vld [vmem:[%s1 + $0x2f8] sm:$0xf]
    %v230 = vld [vmem:[%s1 + $0x2fc] sm:$0xf]
    %v237 = vunpack.c.l.b16 %v33
    %v238 = vunpack.c.h.b16 %v33
    %v239 = vunpack.c.l.b16 %v34
    %v240 = vunpack.c.h.b16 %v34
    %v241 = vunpack.c.l.b16 %v35
    %v242 = vunpack.c.h.b16 %v35
    %v243 = vunpack.c.l.b16 %v36
    %v244 = vunpack.c.h.b16 %v36
    %v245 = vunpack.c.l.b16 %v37
    %v246 = vunpack.c.h.b16 %v37
    %v247 = vunpack.c.l.b16 %v38
    %v248 = vunpack.c.h.b16 %v38
    %v249 = vpack.c.b16 %v237, %v237
    %v250 = vpack.c.b16 %v238, %v238
    %v251 = vpack.c.b16 %v239, %v239
    %v252 = vpack.c.b16 %v240, %v240
    %v253 = vpack.c.b16 %v241, %v241
    %v254 = vpack.c.b16 %v242, %v242
    %v255 = vpack.c.b16 %v243, %v243
    %v256 = vpack.c.b16 %v244, %v244
    %v257 = vpack.c.b16 %v245, %v245
    %v258 = vpack.c.b16 %v246, %v246
    %v259 = vpack.c.b16 %v247, %v247
    %v260 = vpack.c.b16 %v248, %v248
    %v465 = vunpack.c.l.b16 %v39
    %v466 = vunpack.c.l.b16 %v40
    %v467 = vunpack.c.l.b16 %v41
    %v468 = vunpack.c.l.b16 %v42
    %v469 = vunpack.c.l.b16 %v43
    %v470 = vunpack.c.l.b16 %v44
    %v471 = vunpack.c.l.b16 %v45
    %v472 = vunpack.c.l.b16 %v46
    %v473 = vunpack.c.l.b16 %v47
    %v474 = vunpack.c.l.b16 %v48
    %v475 = vunpack.c.l.b16 %v49
    %v476 = vunpack.c.l.b16 %v50
    %v477 = vunpack.c.l.b16 %v51
    %v478 = vunpack.c.l.b16 %v52
    %v479 = vunpack.c.l.b16 %v53
    %v480 = vunpack.c.l.b16 %v54
    %v481 = vunpack.c.l.b16 %v55
    %v482 = vunpack.c.l.b16 %v56
    %v483 = vunpack.c.l.b16 %v57
    %v484 = vunpack.c.l.b16 %v58
    %v485 = vunpack.c.l.b16 %v59
    %v486 = vunpack.c.l.b16 %v60
    %v487 = vunpack.c.l.b16 %v61
    %v488 = vunpack.c.l.b16 %v62
    %v489 = vunpack.c.l.b16 %v63
    %v490 = vunpack.c.l.b16 %v64
    %v491 = vunpack.c.l.b16 %v65
    %v492 = vunpack.c.l.b16 %v66
    %v493 = vunpack.c.l.b16 %v67
    %v494 = vunpack.c.l.b16 %v68
    %v495 = vunpack.c.l.b16 %v69
    %v496 = vunpack.c.l.b16 %v70
    %v497 = vunpack.c.l.b16 %v71
    %v498 = vunpack.c.l.b16 %v72
    %v499 = vunpack.c.l.b16 %v73
    %v500 = vunpack.c.l.b16 %v74
    %v501 = vunpack.c.l.b16 %v75
    %v502 = vunpack.c.l.b16 %v76
    %v503 = vunpack.c.l.b16 %v77
    %v504 = vunpack.c.l.b16 %v78
    %v505 = vunpack.c.l.b16 %v79
    %v506 = vunpack.c.l.b16 %v80
    %v507 = vunpack.c.l.b16 %v81
    %v508 = vunpack.c.l.b16 %v82
    %v509 = vunpack.c.l.b16 %v83
    %v510 = vunpack.c.l.b16 %v84
    %v511 = vunpack.c.l.b16 %v85
    %v512 = vunpack.c.l.b16 %v86
    %v513 = vunpack.c.l.b16 %v87
    %v514 = vunpack.c.l.b16 %v88
    %v515 = vunpack.c.l.b16 %v89
    %v516 = vunpack.c.l.b16 %v90
    %v517 = vunpack.c.l.b16 %v91
    %v518 = vunpack.c.l.b16 %v92
    %v519 = vunpack.c.l.b16 %v93
    %v520 = vunpack.c.l.b16 %v94
    %v521 = vunpack.c.l.b16 %v95
    %v522 = vunpack.c.l.b16 %v96
    %v523 = vunpack.c.l.b16 %v97
    %v524 = vunpack.c.l.b16 %v98
    %v525 = vunpack.c.l.b16 %v99
    %v526 = vunpack.c.l.b16 %v100
    %v527 = vunpack.c.l.b16 %v101
    %v528 = vunpack.c.l.b16 %v102
    %v529 = vunpack.c.l.b16 %v103
    %v530 = vunpack.c.l.b16 %v104
    %v531 = vunpack.c.l.b16 %v105
    %v532 = vunpack.c.l.b16 %v106
    %v533 = vunpack.c.l.b16 %v107
    %v534 = vunpack.c.l.b16 %v108
    %v535 = vunpack.c.l.b16 %v109
    %v536 = vunpack.c.l.b16 %v110
    %v537 = vunpack.c.l.b16 %v111
    %v538 = vunpack.c.l.b16 %v112
    %v539 = vunpack.c.l.b16 %v113
    %v540 = vunpack.c.l.b16 %v114
    %v541 = vunpack.c.l.b16 %v115
    %v542 = vunpack.c.l.b16 %v116
    %v543 = vunpack.c.l.b16 %v117
    %v544 = vunpack.c.l.b16 %v118
    %v545 = vunpack.c.l.b16 %v119
    %v546 = vunpack.c.l.b16 %v120
    %v547 = vunpack.c.l.b16 %v121
    %v548 = vunpack.c.l.b16 %v122
    %v549 = vunpack.c.l.b16 %v123
    %v550 = vunpack.c.l.b16 %v124
    %v551 = vunpack.c.l.b16 %v125
    %v552 = vunpack.c.l.b16 %v126
    %v553 = vunpack.c.l.b16 %v127
    %v554 = vunpack.c.l.b16 %v128
    %v555 = vunpack.c.l.b16 %v129
    %v556 = vunpack.c.l.b16 %v130
    %v557 = vunpack.c.l.b16 %v131
    %v558 = vunpack.c.l.b16 %v132
    %v559 = vunpack.c.l.b16 %v133
    %v560 = vunpack.c.l.b16 %v134
    %v561 = vunpack.c.l.b16 %v135
    %v562 = vunpack.c.l.b16 %v136
    %v563 = vunpack.c.l.b16 %v137
    %v564 = vunpack.c.l.b16 %v138
    %v565 = vunpack.c.l.b16 %v139
    %v566 = vunpack.c.l.b16 %v140
    %v567 = vunpack.c.l.b16 %v141
    %v568 = vunpack.c.l.b16 %v142
    %v569 = vunpack.c.l.b16 %v143
    %v570 = vunpack.c.l.b16 %v144
    %v571 = vunpack.c.l.b16 %v145
    %v572 = vunpack.c.l.b16 %v146
    %v573 = vunpack.c.l.b16 %v147
    %v574 = vunpack.c.l.b16 %v148
    %v575 = vunpack.c.l.b16 %v149
    %v576 = vunpack.c.l.b16 %v150
    %v577 = vunpack.c.l.b16 %v151
    %v578 = vunpack.c.l.b16 %v152
    %v579 = vunpack.c.l.b16 %v153
    %v580 = vunpack.c.l.b16 %v154
    %v581 = vunpack.c.l.b16 %v155
    %v582 = vunpack.c.l.b16 %v156
    %v583 = vunpack.c.l.b16 %v157
    %v584 = vunpack.c.l.b16 %v158
    %v585 = vunpack.c.l.b16 %v159
    %v586 = vunpack.c.l.b16 %v160
    %v587 = vunpack.c.l.b16 %v161
    %v588 = vunpack.c.l.b16 %v162
    %v589 = vunpack.c.l.b16 %v163
    %v590 = vunpack.c.l.b16 %v164
    %v591 = vunpack.c.l.b16 %v165
    %v592 = vunpack.c.l.b16 %v166
    %v593 = vunpack.c.l.b16 %v167
    %v594 = vunpack.c.l.b16 %v168
    %v595 = vunpack.c.l.b16 %v169
    %v596 = vunpack.c.l.b16 %v170
    %v597 = vunpack.c.l.b16 %v171
    %v598 = vunpack.c.l.b16 %v172
    %v599 = vunpack.c.l.b16 %v173
    %v600 = vunpack.c.l.b16 %v174
    %v601 = vunpack.c.l.b16 %v175
    %v602 = vunpack.c.l.b16 %v176
    %v603 = vunpack.c.l.b16 %v177
    %v604 = vunpack.c.l.b16 %v178
    %v605 = vunpack.c.l.b16 %v179
    %v606 = vunpack.c.l.b16 %v180
    %v607 = vunpack.c.l.b16 %v181
    %v608 = vunpack.c.l.b16 %v182
    %v609 = vunpack.c.l.b16 %v183
    %v610 = vunpack.c.l.b16 %v184
    %v611 = vunpack.c.l.b16 %v185
    %v612 = vunpack.c.l.b16 %v186
    %v613 = vunpack.c.l.b16 %v187
    %v614 = vunpack.c.l.b16 %v188
    %v615 = vunpack.c.l.b16 %v189
    %v616 = vunpack.c.l.b16 %v190
    %v617 = vunpack.c.l.b16 %v191
    %v618 = vunpack.c.l.b16 %v192
    %v619 = vunpack.c.l.b16 %v193
    %v620 = vunpack.c.l.b16 %v194
    %v621 = vunpack.c.l.b16 %v195
    %v622 = vunpack.c.l.b16 %v196
    %v623 = vunpack.c.l.b16 %v197
    %v624 = vunpack.c.l.b16 %v198
    %v625 = vunpack.c.l.b16 %v199
    %v626 = vunpack.c.l.b16 %v200
    %v627 = vunpack.c.l.b16 %v201
    %v628 = vunpack.c.l.b16 %v202
    %v629 = vunpack.c.l.b16 %v203
    %v630 = vunpack.c.l.b16 %v204
    %v631 = vunpack.c.l.b16 %v205
    %v632 = vunpack.c.l.b16 %v206
    %v633 = vunpack.c.l.b16 %v207
    %v634 = vunpack.c.l.b16 %v208
    %v635 = vunpack.c.l.b16 %v209
    %v636 = vunpack.c.l.b16 %v210
    %v637 = vunpack.c.l.b16 %v211
    %v638 = vunpack.c.l.b16 %v212
    %v639 = vunpack.c.l.b16 %v213
    %v640 = vunpack.c.l.b16 %v214
    %v641 = vunpack.c.l.b16 %v215
    %v642 = vunpack.c.l.b16 %v216
    %v643 = vunpack.c.l.b16 %v217
    %v644 = vunpack.c.l.b16 %v218
    %v645 = vunpack.c.l.b16 %v219
    %v646 = vunpack.c.l.b16 %v220
    %v647 = vunpack.c.l.b16 %v221
    %v648 = vunpack.c.l.b16 %v222
    %v649 = vunpack.c.l.b16 %v223
    %v650 = vunpack.c.l.b16 %v224
    %v651 = vunpack.c.l.b16 %v225
    %v652 = vunpack.c.l.b16 %v226
    %v653 = vunpack.c.l.b16 %v227
    %v654 = vunpack.c.l.b16 %v228
    %v655 = vunpack.c.l.b16 %v229
    %v656 = vunpack.c.l.b16 %v230
    %v657 = vpack.c.b16 %v466, %v465
    %v658 = vpack.c.b16 %v468, %v467
    %v659 = vpack.c.b16 %v470, %v469
    %v660 = vpack.c.b16 %v472, %v471
    %v661 = vpack.c.b16 %v474, %v473
    %v662 = vpack.c.b16 %v476, %v475
    %v663 = vpack.c.b16 %v478, %v477
    %v664 = vpack.c.b16 %v480, %v479
    %v665 = vpack.c.b16 %v482, %v481
    %v666 = vpack.c.b16 %v484, %v483
    %v667 = vpack.c.b16 %v486, %v485
    %v668 = vpack.c.b16 %v488, %v487
    %v669 = vpack.c.b16 %v490, %v489
    %v670 = vpack.c.b16 %v492, %v491
    %v671 = vpack.c.b16 %v494, %v493
    %v672 = vpack.c.b16 %v496, %v495
    %v673 = vpack.c.b16 %v498, %v497
    %v674 = vpack.c.b16 %v500, %v499
    %v675 = vpack.c.b16 %v502, %v501
    %v676 = vpack.c.b16 %v504, %v503
    %v677 = vpack.c.b16 %v506, %v505
    %v678 = vpack.c.b16 %v508, %v507
    %v679 = vpack.c.b16 %v510, %v509
    %v680 = vpack.c.b16 %v512, %v511
    %v681 = vpack.c.b16 %v514, %v513
    %v682 = vpack.c.b16 %v516, %v515
    %v683 = vpack.c.b16 %v518, %v517
    %v684 = vpack.c.b16 %v520, %v519
    %v685 = vpack.c.b16 %v522, %v521
    %v686 = vpack.c.b16 %v524, %v523
    %v687 = vpack.c.b16 %v526, %v525
    %v688 = vpack.c.b16 %v528, %v527
    %v689 = vpack.c.b16 %v530, %v529
    %v690 = vpack.c.b16 %v532, %v531
    %v691 = vpack.c.b16 %v534, %v533
    %v692 = vpack.c.b16 %v536, %v535
    %v693 = vpack.c.b16 %v538, %v537
    %v694 = vpack.c.b16 %v540, %v539
    %v695 = vpack.c.b16 %v542, %v541
    %v696 = vpack.c.b16 %v544, %v543
    %v697 = vpack.c.b16 %v546, %v545
    %v698 = vpack.c.b16 %v548, %v547
    %v699 = vpack.c.b16 %v550, %v549
    %v700 = vpack.c.b16 %v552, %v551
    %v701 = vpack.c.b16 %v554, %v553
    %v702 = vpack.c.b16 %v556, %v555
    %v703 = vpack.c.b16 %v558, %v557
    %v704 = vpack.c.b16 %v560, %v559
    %v705 = vpack.c.b16 %v562, %v561
    %v706 = vpack.c.b16 %v564, %v563
    %v707 = vpack.c.b16 %v566, %v565
    %v708 = vpack.c.b16 %v568, %v567
    %v709 = vpack.c.b16 %v570, %v569
    %v710 = vpack.c.b16 %v572, %v571
    %v711 = vpack.c.b16 %v574, %v573
    %v712 = vpack.c.b16 %v576, %v575
    %v713 = vpack.c.b16 %v578, %v577
    %v714 = vpack.c.b16 %v580, %v579
    %v715 = vpack.c.b16 %v582, %v581
    %v716 = vpack.c.b16 %v584, %v583
    %v717 = vpack.c.b16 %v586, %v585
    %v718 = vpack.c.b16 %v588, %v587
    %v719 = vpack.c.b16 %v590, %v589
    %v720 = vpack.c.b16 %v592, %v591
    %v721 = vpack.c.b16 %v594, %v593
    %v722 = vpack.c.b16 %v596, %v595
    %v723 = vpack.c.b16 %v598, %v597
    %v724 = vpack.c.b16 %v600, %v599
    %v725 = vpack.c.b16 %v602, %v601
    %v726 = vpack.c.b16 %v604, %v603
    %v727 = vpack.c.b16 %v606, %v605
    %v728 = vpack.c.b16 %v608, %v607
    %v729 = vpack.c.b16 %v610, %v609
    %v730 = vpack.c.b16 %v612, %v611
    %v731 = vpack.c.b16 %v614, %v613
    %v732 = vpack.c.b16 %v616, %v615
    %v733 = vpack.c.b16 %v618, %v617
    %v734 = vpack.c.b16 %v620, %v619
    %v735 = vpack.c.b16 %v622, %v621
    %v736 = vpack.c.b16 %v624, %v623
    %v737 = vpack.c.b16 %v626, %v625
    %v738 = vpack.c.b16 %v628, %v627
    %v739 = vpack.c.b16 %v630, %v629
    %v740 = vpack.c.b16 %v632, %v631
    %v741 = vpack.c.b16 %v634, %v633
    %v742 = vpack.c.b16 %v636, %v635
    %v743 = vpack.c.b16 %v638, %v637
    %v744 = vpack.c.b16 %v640, %v639
    %v745 = vpack.c.b16 %v642, %v641
    %v746 = vpack.c.b16 %v644, %v643
    %v747 = vpack.c.b16 %v646, %v645
    %v748 = vpack.c.b16 %v648, %v647
    %v749 = vpack.c.b16 %v650, %v649
    %v750 = vpack.c.b16 %v652, %v651
    %v751 = vpack.c.b16 %v654, %v653
    %v752 = vpack.c.b16 %v656, %v655
    %849 = vmatpush.bf16.msra.mxu0 %v664
    %850 = vmatpush.bf16.msra.mxu0 %v663
    %851 = vmatpush.bf16.msra.mxu0 %v662
    %852 = vmatpush.bf16.msra.mxu0 %v661
    %853 = vmatpush.bf16.msra.mxu0 %v660
    %854 = vmatpush.bf16.msra.mxu0 %v659
    %855 = vmatpush.bf16.msra.mxu0 %v658
    %856 = vmatpush.bf16.msra.mxu0 %v657
    %857 = vmatmul.bf16.gmra.mxu0 %v249
    %v858 = vpop.f32.mrf.mxu0
    %v859 = vadd.f32 0.0, %v858
    %v860 = vpop.f32.mrf.mxu0
    %861 = vdwg.mxu0
    %862 = vmatpush.bf16.msra.mxu0 %v672
    %863 = vmatpush.bf16.msra.mxu0 %v671
    %864 = vmatpush.bf16.msra.mxu0 %v670
    %865 = vmatpush.bf16.msra.mxu0 %v669
    %866 = vmatpush.bf16.msra.mxu0 %v668
    %867 = vmatpush.bf16.msra.mxu0 %v667
    %868 = vmatpush.bf16.msra.mxu0 %v666
    %869 = vmatpush.bf16.msra.mxu0 %v665
    %870 = vmatmul.bf16.gmra.mxu0 %v250
    %v871 = vpop.f32.mrf.mxu0
    %v872 = vadd.f32 %v859, %v871
    %v873 = vpop.f32.mrf.mxu0
    %874 = vdwg.mxu0
    %875 = vmatpush.bf16.msra.mxu0 %v680
    %876 = vmatpush.bf16.msra.mxu0 %v679
    %877 = vmatpush.bf16.msra.mxu0 %v678
    %878 = vmatpush.bf16.msra.mxu0 %v677
    %879 = vmatpush.bf16.msra.mxu0 %v676
    %880 = vmatpush.bf16.msra.mxu0 %v675
    %881 = vmatpush.bf16.msra.mxu0 %v674
    %882 = vmatpush.bf16.msra.mxu0 %v673
    %883 = vmatmul.bf16.gmra.mxu0 %v251
    %v884 = vpop.f32.mrf.mxu0
    %v885 = vadd.f32 %v872, %v884
    %v886 = vpop.f32.mrf.mxu0
    %887 = vdwg.mxu0
    %888 = vmatpush.bf16.msra.mxu0 %v688
    %889 = vmatpush.bf16.msra.mxu0 %v687
    %890 = vmatpush.bf16.msra.mxu0 %v686
    %891 = vmatpush.bf16.msra.mxu0 %v685
    %892 = vmatpush.bf16.msra.mxu0 %v684
    %893 = vmatpush.bf16.msra.mxu0 %v683
    %894 = vmatpush.bf16.msra.mxu0 %v682
    %895 = vmatpush.bf16.msra.mxu0 %v681
    %896 = vmatmul.bf16.gmra.mxu0 %v252
    %v897 = vpop.f32.mrf.mxu0
    %v898 = vadd.f32 %v885, %v897
    %v899 = vpop.f32.mrf.mxu0
    %900 = vdwg.mxu0
    %901 = vmatpush.bf16.msra.mxu0 %v696
    %902 = vmatpush.bf16.msra.mxu0 %v695
    %903 = vmatpush.bf16.msra.mxu0 %v694
    %904 = vmatpush.bf16.msra.mxu0 %v693
    %905 = vmatpush.bf16.msra.mxu0 %v692
    %906 = vmatpush.bf16.msra.mxu0 %v691
    %907 = vmatpush.bf16.msra.mxu0 %v690
    %908 = vmatpush.bf16.msra.mxu0 %v689
    %909 = vmatmul.bf16.gmra.mxu0 %v253
    %v910 = vpop.f32.mrf.mxu0
    %v911 = vadd.f32 %v898, %v910
    %v912 = vpop.f32.mrf.mxu0
    %913 = vdwg.mxu0
    %914 = vmatpush.bf16.msra.mxu0 %v704
    %915 = vmatpush.bf16.msra.mxu0 %v703
    %916 = vmatpush.bf16.msra.mxu0 %v702
    %917 = vmatpush.bf16.msra.mxu0 %v701
    %918 = vmatpush.bf16.msra.mxu0 %v700
    %919 = vmatpush.bf16.msra.mxu0 %v699
    %920 = vmatpush.bf16.msra.mxu0 %v698
    %921 = vmatpush.bf16.msra.mxu0 %v697
    %922 = vmatmul.bf16.gmra.mxu0 %v254
    %v923 = vpop.f32.mrf.mxu0
    %v924 = vadd.f32 %v911, %v923
    %v925 = vpop.f32.mrf.mxu0
    %926 = vdwg.mxu0
    %927 = vmatpush.bf16.msra.mxu0 %v712
    %928 = vmatpush.bf16.msra.mxu0 %v711
    %929 = vmatpush.bf16.msra.mxu0 %v710
    %930 = vmatpush.bf16.msra.mxu0 %v709
    %931 = vmatpush.bf16.msra.mxu0 %v708
    %932 = vmatpush.bf16.msra.mxu0 %v707
    %933 = vmatpush.bf16.msra.mxu0 %v706
    %934 = vmatpush.bf16.msra.mxu0 %v705
    %935 = vmatmul.bf16.gmra.mxu0 %v255
    %v936 = vpop.f32.mrf.mxu0
    %v937 = vadd.f32 %v924, %v936
    %v938 = vpop.f32.mrf.mxu0
    %939 = vdwg.mxu0
    %940 = vmatpush.bf16.msra.mxu0 %v720
    %941 = vmatpush.bf16.msra.mxu0 %v719
    %942 = vmatpush.bf16.msra.mxu0 %v718
    %943 = vmatpush.bf16.msra.mxu0 %v717
    %944 = vmatpush.bf16.msra.mxu0 %v716
    %945 = vmatpush.bf16.msra.mxu0 %v715
    %946 = vmatpush.bf16.msra.mxu0 %v714
    %947 = vmatpush.bf16.msra.mxu0 %v713
    %948 = vmatmul.bf16.gmra.mxu0 %v256
    %v949 = vpop.f32.mrf.mxu0
    %v950 = vadd.f32 %v937, %v949
    %v951 = vpop.f32.mrf.mxu0
    %952 = vdwg.mxu0
    %953 = vmatpush.bf16.msra.mxu0 %v728
    %954 = vmatpush.bf16.msra.mxu0 %v727
    %955 = vmatpush.bf16.msra.mxu0 %v726
    %956 = vmatpush.bf16.msra.mxu0 %v725
    %957 = vmatpush.bf16.msra.mxu0 %v724
    %958 = vmatpush.bf16.msra.mxu0 %v723
    %959 = vmatpush.bf16.msra.mxu0 %v722
    %960 = vmatpush.bf16.msra.mxu0 %v721
    %961 = vmatmul.bf16.gmra.mxu0 %v257
    %v962 = vpop.f32.mrf.mxu0
    %v963 = vadd.f32 %v950, %v962
    %v964 = vpop.f32.mrf.mxu0
    %965 = vdwg.mxu0
    %966 = vmatpush.bf16.msra.mxu0 %v736
    %967 = vmatpush.bf16.msra.mxu0 %v735
    %968 = vmatpush.bf16.msra.mxu0 %v734
    %969 = vmatpush.bf16.msra.mxu0 %v733
    %970 = vmatpush.bf16.msra.mxu0 %v732
    %971 = vmatpush.bf16.msra.mxu0 %v731
    %972 = vmatpush.bf16.msra.mxu0 %v730
    %973 = vmatpush.bf16.msra.mxu0 %v729
    %974 = vmatmul.bf16.gmra.mxu0 %v258
    %v975 = vpop.f32.mrf.mxu0
    %v976 = vadd.f32 %v963, %v975
    %v977 = vpop.f32.mrf.mxu0
    %978 = vdwg.mxu0
    %979 = vmatpush.bf16.msra.mxu0 %v744
    %980 = vmatpush.bf16.msra.mxu0 %v743
    %981 = vmatpush.bf16.msra.mxu0 %v742
    %982 = vmatpush.bf16.msra.mxu0 %v741
    %983 = vmatpush.bf16.msra.mxu0 %v740
    %984 = vmatpush.bf16.msra.mxu0 %v739
    %985 = vmatpush.bf16.msra.mxu0 %v738
    %986 = vmatpush.bf16.msra.mxu0 %v737
    %987 = vmatmul.bf16.gmra.mxu0 %v259
    %v988 = vpop.f32.mrf.mxu0
    %v989 = vadd.f32 %v976, %v988
    %v990 = vpop.f32.mrf.mxu0
    %991 = vdwg.mxu0
    %992 = vmatpush.bf16.msra.mxu0 %v752
    %993 = vmatpush.bf16.msra.mxu0 %v751
    %994 = vmatpush.bf16.msra.mxu0 %v750
    %995 = vmatpush.bf16.msra.mxu0 %v749
    %996 = vmatpush.bf16.msra.mxu0 %v748
    %997 = vmatpush.bf16.msra.mxu0 %v747
    %998 = vmatpush.bf16.msra.mxu0 %v746
    %999 = vmatpush.bf16.msra.mxu0 %v745
    %1000 = vmatmul.bf16.gmra.mxu0 %v260
    %v1001 = vpop.f32.mrf.mxu0
    %v1002 = vadd.f32 %v989, %v1001
    %v1003 = vpop.f32.mrf.mxu0
    %1004 = vdwg.mxu0
    %v1005 = vtanh.pop %v1002
    %v1006 = vpack.c.bf16 %v1005, %v1005
    %v1007 = vunpack.c.l.bf16 %v1006
    %v1008 = vld [vmem:[%s2] sm:$0xff]
    %v1009 = vld [vmem:[%s2 + $0x8] sm:$0xff]
    %v1010 = vld [vmem:[%s2 + $0x10] sm:$0xff]
    %v1011 = vld [vmem:[%s2 + $0x18] sm:$0xff]
    %v1012 = vld [vmem:[%s2 + $0x20] sm:$0xff]
    %v1013 = vld [vmem:[%s2 + $0x28] sm:$0xff]
    %v1014 = vld [vmem:[%s2 + $0x30] sm:$0xff]
    %v1015 = vld [vmem:[%s2 + $0x38] sm:$0xff]
    %v1016 = vld [vmem:[%s3] sm:$0x3]
    %v1018 = vperm.slane %v1016, 0
    %v1019 = vperm.slane %v1016, 1
    %vm1022 = vcmask 261120
    %v1024 = vsel %vm1022, %v1007, 0
    %1026 = vmatpush.msra.mxu0 0.0
    %1027 = vmatpush.msra.mxu0 0.0
    %1028 = vmatpush.msra.mxu0 0.0
    %1029 = vmatpush.msra.mxu0 0.0
    %1030 = vmatpush.msra.mxu0 0.0
    %1031 = vmatpush.msra.mxu0 0.0
    %1032 = vmatpush.msra.mxu0 0.0
    %1033 = vmatpush.msra.mxu0 0.0
    %1034 = vmatpush.msra.mxu0 0.0
    %1035 = vmatpush.msra.mxu0 0.0
    %1036 = vmatpush.msra.mxu0 0.0
    %1037 = vmatpush.msra.mxu0 0.0
    %1038 = vmatpush.msra.mxu0 %v1014
    %1039 = vmatpush.msra.mxu0 %v1012
    %1040 = vmatpush.msra.mxu0 %v1010
    %1041 = vmatpush.msra.mxu0 %v1008
    %1042 = vmatmul.f32.gmra.mxu0 %v1024
    %v1043 = vpop.f32.mrf.mxu0
    %v1044 = vadd.f32 %v1018, %v1043
    %1045 = vdwg.mxu0
    %1046 = vmatpush.msra.mxu0 0.0
    %1047 = vmatpush.msra.mxu0 0.0
    %1048 = vmatpush.msra.mxu0 0.0
    %1049 = vmatpush.msra.mxu0 0.0
    %1050 = vmatpush.msra.mxu0 0.0
    %1051 = vmatpush.msra.mxu0 0.0
    %1052 = vmatpush.msra.mxu0 0.0
    %1053 = vmatpush.msra.mxu0 0.0
    %1054 = vmatpush.msra.mxu0 0.0
    %1055 = vmatpush.msra.mxu0 0.0
    %1056 = vmatpush.msra.mxu0 0.0
    %1057 = vmatpush.msra.mxu0 0.0
    %1058 = vmatpush.msra.mxu0 %v1015
    %1059 = vmatpush.msra.mxu0 %v1013
    %1060 = vmatpush.msra.mxu0 %v1011
    %1061 = vmatpush.msra.mxu0 %v1009
    %1062 = vmatmul.f32.gmra.mxu0 %v1024
    %v1063 = vpop.f32.mrf.mxu0
    %v1064 = vadd.f32 %v1019, %v1063
    %1065 = vdwg.mxu0
    %v1066 = vmul.f32 %v1044, %v1044
    %v1067 = vmul.f32 %v1064, %v1064
    %v1068 = vadd.f32 %v1066, %v1067
    %1069 = vadd.xlane.f32.xlu0 %v1068
    %v1070 = vpop.xlane.xlu0 %1069
    %v1071 = vrcp.pop 256.0
    %v1072 = vmul.f32 256.0, %v1071
    %v1073 = vsub.f32 1.0, %v1072
    %v1074 = vmul.f32 %v1071, %v1073
    %v1075 = vadd.f32 %v1071, %v1074
    %vm1076 = vweird.f32 %v1071
    %v1077 = vsel %vm1076, %v1071, %v1075
    %v1078 = vmul.f32 %v1070, %v1077
    %v1079 = vadd.f32 %v1078, 1.1920929e-07
    %v1080 = vrsqrt.pop %v1079
    %v1081 = vmul.f32 %v1080, %v1079
    %v1082 = vmul.f32 %v1081, %v1080
    %v1083 = vmul.f32 0.5, %v1082
    %v1084 = vsub.f32 1.5, %v1083
    %v1085 = vmul.f32 %v1080, %v1084
    %vm1086 = vweird.f32 %v1079
    %vm1087 = vweird.f32 %v1080
    %vm1088 = vmor %vm1086, %vm1087
    %v1089 = vsel %vm1088, %v1080, %v1085
    %v1090 = vmul.f32 %v1044, %v1089
    %v1091 = vmul.f32 %v1064, %v1089
    %v1092 = vld [vmem:[%s4] sm:$0xff]
    %v1093 = vld [vmem:[%s4 + $0x8] sm:$0xff]
    %v1094 = vld [vmem:[%s4 + $0x10] sm:$0xff]
    %v1095 = vld [vmem:[%s4 + $0x18] sm:$0xff]
    %v1096 = vld [vmem:[%s4 + $0x20] sm:$0xff]
    %v1097 = vld [vmem:[%s4 + $0x28] sm:$0xff]
    %v1098 = vld [vmem:[%s4 + $0x30] sm:$0xff]
    %v1099 = vld [vmem:[%s4 + $0x38] sm:$0xff]
    %v1100 = vld [vmem:[%s4 + $0x40] sm:$0xff]
    %v1101 = vld [vmem:[%s4 + $0x48] sm:$0xff]
    %v1102 = vld [vmem:[%s4 + $0x50] sm:$0xff]
    %v1103 = vld [vmem:[%s4 + $0x58] sm:$0xff]
    %v1104 = vld [vmem:[%s4 + $0x60] sm:$0xff]
    %v1105 = vld [vmem:[%s4 + $0x68] sm:$0xff]
    %v1106 = vld [vmem:[%s4 + $0x70] sm:$0xff]
    %v1107 = vld [vmem:[%s4 + $0x78] sm:$0xff]
    %v1108 = vld [vmem:[%s4 + $0x80] sm:$0xff]
    %v1109 = vld [vmem:[%s4 + $0x88] sm:$0xff]
    %v1110 = vld [vmem:[%s4 + $0x90] sm:$0xff]
    %v1111 = vld [vmem:[%s4 + $0x98] sm:$0xff]
    %v1112 = vld [vmem:[%s4 + $0xa0] sm:$0xff]
    %v1113 = vld [vmem:[%s4 + $0xa8] sm:$0xff]
    %v1114 = vld [vmem:[%s4 + $0xb0] sm:$0xff]
    %v1115 = vld [vmem:[%s4 + $0xb8] sm:$0xff]
    %v1116 = vld [vmem:[%s4 + $0xc0] sm:$0xff]
    %v1117 = vld [vmem:[%s4 + $0xc8] sm:$0xff]
    %v1118 = vld [vmem:[%s4 + $0xd0] sm:$0xff]
    %v1119 = vld [vmem:[%s4 + $0xd8] sm:$0xff]
    %v1120 = vld [vmem:[%s4 + $0xe0] sm:$0xff]
    %v1121 = vld [vmem:[%s4 + $0xe8] sm:$0xff]
    %v1122 = vld [vmem:[%s4 + $0xf0] sm:$0xff]
    %v1123 = vld [vmem:[%s4 + $0xf8] sm:$0xff]
    %v1124 = vld [vmem:[%s4 + $0x100] sm:$0xff]
    %v1125 = vld [vmem:[%s4 + $0x108] sm:$0xff]
    %v1126 = vld [vmem:[%s4 + $0x110] sm:$0xff]
    %v1127 = vld [vmem:[%s4 + $0x118] sm:$0xff]
    %v1128 = vld [vmem:[%s4 + $0x120] sm:$0xff]
    %v1129 = vld [vmem:[%s4 + $0x128] sm:$0xff]
    %v1130 = vld [vmem:[%s4 + $0x130] sm:$0xff]
    %v1131 = vld [vmem:[%s4 + $0x138] sm:$0xff]
    %v1132 = vld [vmem:[%s4 + $0x140] sm:$0xff]
    %v1133 = vld [vmem:[%s4 + $0x148] sm:$0xff]
    %v1134 = vld [vmem:[%s4 + $0x150] sm:$0xff]
    %v1135 = vld [vmem:[%s4 + $0x158] sm:$0xff]
    %v1136 = vld [vmem:[%s4 + $0x160] sm:$0xff]
    %v1137 = vld [vmem:[%s4 + $0x168] sm:$0xff]
    %v1138 = vld [vmem:[%s4 + $0x170] sm:$0xff]
    %v1139 = vld [vmem:[%s4 + $0x178] sm:$0xff]
    %v1140 = vld [vmem:[%s4 + $0x180] sm:$0xff]
    %v1141 = vld [vmem:[%s4 + $0x188] sm:$0xff]
    %v1142 = vld [vmem:[%s4 + $0x190] sm:$0xff]
    %v1143 = vld [vmem:[%s4 + $0x198] sm:$0xff]
    %v1144 = vld [vmem:[%s4 + $0x1a0] sm:$0xff]
    %v1145 = vld [vmem:[%s4 + $0x1a8] sm:$0xff]
    %v1146 = vld [vmem:[%s4 + $0x1b0] sm:$0xff]
    %v1147 = vld [vmem:[%s4 + $0x1b8] sm:$0xff]
    %v1148 = vld [vmem:[%s4 + $0x1c0] sm:$0xff]
    %v1149 = vld [vmem:[%s4 + $0x1c8] sm:$0xff]
    %v1150 = vld [vmem:[%s4 + $0x1d0] sm:$0xff]
    %v1151 = vld [vmem:[%s4 + $0x1d8] sm:$0xff]
    %v1152 = vld [vmem:[%s4 + $0x1e0] sm:$0xff]
    %v1153 = vld [vmem:[%s4 + $0x1e8] sm:$0xff]
    %v1154 = vld [vmem:[%s4 + $0x1f0] sm:$0xff]
    %v1155 = vld [vmem:[%s4 + $0x1f8] sm:$0xff]
    %v1156 = vld [vmem:[%s5] sm:$0x3]
    %v1158 = vperm.slane %v1156, 0
    %v1159 = vperm.slane %v1156, 1
    %1162 = vmatpush.msra.mxu0 %v1122
    %1163 = vmatpush.msra.mxu0 %v1120
    %1164 = vmatpush.msra.mxu0 %v1118
    %1165 = vmatpush.msra.mxu0 %v1116
    %1166 = vmatpush.msra.mxu0 %v1114
    %1167 = vmatpush.msra.mxu0 %v1112
    %1168 = vmatpush.msra.mxu0 %v1110
    %1169 = vmatpush.msra.mxu0 %v1108
    %1170 = vmatpush.msra.mxu0 %v1106
    %1171 = vmatpush.msra.mxu0 %v1104
    %1172 = vmatpush.msra.mxu0 %v1102
    %1173 = vmatpush.msra.mxu0 %v1100
    %1174 = vmatpush.msra.mxu0 %v1098
    %1175 = vmatpush.msra.mxu0 %v1096
    %1176 = vmatpush.msra.mxu0 %v1094
    %1177 = vmatpush.msra.mxu0 %v1092
    %1178 = vmatmul.f32.gmra.mxu0 %v1090
    %v1179 = vpop.f32.mrf.mxu0
    %v1180 = vadd.f32 %v1158, %v1179
    %1181 = vdwg.mxu0
    %1182 = vmatpush.msra.mxu0 %v1154
    %1183 = vmatpush.msra.mxu0 %v1152
    %1184 = vmatpush.msra.mxu0 %v1150
    %1185 = vmatpush.msra.mxu0 %v1148
    %1186 = vmatpush.msra.mxu0 %v1146
    %1187 = vmatpush.msra.mxu0 %v1144
    %1188 = vmatpush.msra.mxu0 %v1142
    %1189 = vmatpush.msra.mxu0 %v1140
    %1190 = vmatpush.msra.mxu0 %v1138
    %1191 = vmatpush.msra.mxu0 %v1136
    %1192 = vmatpush.msra.mxu0 %v1134
    %1193 = vmatpush.msra.mxu0 %v1132
    %1194 = vmatpush.msra.mxu0 %v1130
    %1195 = vmatpush.msra.mxu0 %v1128
    %1196 = vmatpush.msra.mxu0 %v1126
    %1197 = vmatpush.msra.mxu0 %v1124
    %1198 = vmatmul.f32.gmra.mxu0 %v1091
    %v1199 = vpop.f32.mrf.mxu0
    %v1200 = vadd.f32 %v1180, %v1199
    %1201 = vdwg.mxu0
    %1202 = vmatpush.msra.mxu0 %v1123
    %1203 = vmatpush.msra.mxu0 %v1121
    %1204 = vmatpush.msra.mxu0 %v1119
    %1205 = vmatpush.msra.mxu0 %v1117
    %1206 = vmatpush.msra.mxu0 %v1115
    %1207 = vmatpush.msra.mxu0 %v1113
    %1208 = vmatpush.msra.mxu0 %v1111
    %1209 = vmatpush.msra.mxu0 %v1109
    %1210 = vmatpush.msra.mxu0 %v1107
    %1211 = vmatpush.msra.mxu0 %v1105
    %1212 = vmatpush.msra.mxu0 %v1103
    %1213 = vmatpush.msra.mxu0 %v1101
    %1214 = vmatpush.msra.mxu0 %v1099
    %1215 = vmatpush.msra.mxu0 %v1097
    %1216 = vmatpush.msra.mxu0 %v1095
    %1217 = vmatpush.msra.mxu0 %v1093
    %1218 = vmatmul.f32.gmra.mxu0 %v1090
    %v1219 = vpop.f32.mrf.mxu0
    %v1220 = vadd.f32 %v1159, %v1219
    %1221 = vdwg.mxu0
    %1222 = vmatpush.msra.mxu0 %v1155
    %1223 = vmatpush.msra.mxu0 %v1153
    %1224 = vmatpush.msra.mxu0 %v1151
    %1225 = vmatpush.msra.mxu0 %v1149
    %1226 = vmatpush.msra.mxu0 %v1147
    %1227 = vmatpush.msra.mxu0 %v1145
    %1228 = vmatpush.msra.mxu0 %v1143
    %1229 = vmatpush.msra.mxu0 %v1141
    %1230 = vmatpush.msra.mxu0 %v1139
    %1231 = vmatpush.msra.mxu0 %v1137
    %1232 = vmatpush.msra.mxu0 %v1135
    %1233 = vmatpush.msra.mxu0 %v1133
    %1234 = vmatpush.msra.mxu0 %v1131
    %1235 = vmatpush.msra.mxu0 %v1129
    %1236 = vmatpush.msra.mxu0 %v1127
    %1237 = vmatpush.msra.mxu0 %v1125
    %1238 = vmatmul.f32.gmra.mxu0 %v1091
    %v1239 = vpop.f32.mrf.mxu0
    %v1240 = vadd.f32 %v1220, %v1239
    %1241 = vdwg.mxu0
    %v1242 = vmax.f32 %v1200, 0.0
    %v1243 = vmax.f32 %v1240, 0.0
    %v1244 = vld [vmem:[%s6] sm:$0xff]
    %v1245 = vld [vmem:[%s6 + $0x8] sm:$0xff]
    %v1246 = vld [vmem:[%s6 + $0x10] sm:$0xff]
    %v1247 = vld [vmem:[%s6 + $0x18] sm:$0xff]
    %v1248 = vld [vmem:[%s6 + $0x20] sm:$0xff]
    %v1249 = vld [vmem:[%s6 + $0x28] sm:$0xff]
    %v1250 = vld [vmem:[%s6 + $0x30] sm:$0xff]
    %v1251 = vld [vmem:[%s6 + $0x38] sm:$0xff]
    %v1252 = vld [vmem:[%s6 + $0x40] sm:$0xff]
    %v1253 = vld [vmem:[%s6 + $0x48] sm:$0xff]
    %v1254 = vld [vmem:[%s6 + $0x50] sm:$0xff]
    %v1255 = vld [vmem:[%s6 + $0x58] sm:$0xff]
    %v1256 = vld [vmem:[%s6 + $0x60] sm:$0xff]
    %v1257 = vld [vmem:[%s6 + $0x68] sm:$0xff]
    %v1258 = vld [vmem:[%s6 + $0x70] sm:$0xff]
    %v1259 = vld [vmem:[%s6 + $0x78] sm:$0xff]
    %v1260 = vld [vmem:[%s6 + $0x80] sm:$0xff]
    %v1261 = vld [vmem:[%s6 + $0x88] sm:$0xff]
    %v1262 = vld [vmem:[%s6 + $0x90] sm:$0xff]
    %v1263 = vld [vmem:[%s6 + $0x98] sm:$0xff]
    %v1264 = vld [vmem:[%s6 + $0xa0] sm:$0xff]
    %v1265 = vld [vmem:[%s6 + $0xa8] sm:$0xff]
    %v1266 = vld [vmem:[%s6 + $0xb0] sm:$0xff]
    %v1267 = vld [vmem:[%s6 + $0xb8] sm:$0xff]
    %v1268 = vld [vmem:[%s6 + $0xc0] sm:$0xff]
    %v1269 = vld [vmem:[%s6 + $0xc8] sm:$0xff]
    %v1270 = vld [vmem:[%s6 + $0xd0] sm:$0xff]
    %v1271 = vld [vmem:[%s6 + $0xd8] sm:$0xff]
    %v1272 = vld [vmem:[%s6 + $0xe0] sm:$0xff]
    %v1273 = vld [vmem:[%s6 + $0xe8] sm:$0xff]
    %v1274 = vld [vmem:[%s6 + $0xf0] sm:$0xff]
    %v1275 = vld [vmem:[%s6 + $0xf8] sm:$0xff]
    %v1276 = vld [vmem:[%s7] sm:$0x1]
    %v1278 = vperm.slane %v1276, 0
    %1280 = vmatpush.msra.mxu0 %v1259
    %1281 = vmatpush.msra.mxu0 %v1258
    %1282 = vmatpush.msra.mxu0 %v1257
    %1283 = vmatpush.msra.mxu0 %v1256
    %1284 = vmatpush.msra.mxu0 %v1255
    %1285 = vmatpush.msra.mxu0 %v1254
    %1286 = vmatpush.msra.mxu0 %v1253
    %1287 = vmatpush.msra.mxu0 %v1252
    %1288 = vmatpush.msra.mxu0 %v1251
    %1289 = vmatpush.msra.mxu0 %v1250
    %1290 = vmatpush.msra.mxu0 %v1249
    %1291 = vmatpush.msra.mxu0 %v1248
    %1292 = vmatpush.msra.mxu0 %v1247
    %1293 = vmatpush.msra.mxu0 %v1246
    %1294 = vmatpush.msra.mxu0 %v1245
    %1295 = vmatpush.msra.mxu0 %v1244
    %1296 = vmatmul.f32.gmra.mxu0 %v1242
    %v1297 = vpop.f32.mrf.mxu0
    %v1298 = vadd.f32 %v1278, %v1297
    %1299 = vdwg.mxu0
    %1300 = vmatpush.msra.mxu0 %v1275
    %1301 = vmatpush.msra.mxu0 %v1274
    %1302 = vmatpush.msra.mxu0 %v1273
    %1303 = vmatpush.msra.mxu0 %v1272
    %1304 = vmatpush.msra.mxu0 %v1271
    %1305 = vmatpush.msra.mxu0 %v1270
    %1306 = vmatpush.msra.mxu0 %v1269
    %1307 = vmatpush.msra.mxu0 %v1268
    %1308 = vmatpush.msra.mxu0 %v1267
    %1309 = vmatpush.msra.mxu0 %v1266
    %1310 = vmatpush.msra.mxu0 %v1265
    %1311 = vmatpush.msra.mxu0 %v1264
    %1312 = vmatpush.msra.mxu0 %v1263
    %1313 = vmatpush.msra.mxu0 %v1262
    %1314 = vmatpush.msra.mxu0 %v1261
    %1315 = vmatpush.msra.mxu0 %v1260
    %1316 = vmatmul.f32.gmra.mxu0 %v1243
    %v1317 = vpop.f32.mrf.mxu0
    %v1318 = vadd.f32 %v1298, %v1317
    %1319 = vdwg.mxu0
    %v1320 = vld [vmem:[%s8] sm:$0x1]
    %vm1321 = vcmp.gt.f32.partialorder %v1320, 0.5
    %v1322 = vmul.f32 %v1318, 1.442695
    %v1323 = vpow.pop %v1322
    %v1324 = vadd.f32 %v1323, 1.0
    %v1325 = vsel %vm1321, 1, 0
    %v1326 = vperm.slane %v1325, 0
    %vm1327 = vcmp.eq.s32.totalorder %v1326, 1
    %v1328 = vsel %vm1327, %v1324, %v1318
    %1329 = vst [vmem:[#allocation2] sm:$0xff] %v1090
    %1330 = vst [vmem:[#allocation2 + $0x8] sm:$0xff] %v1091
    %1331 = vst [vmem:[#allocation2 + $0x10] sm:$0xff] %v1242
    %1332 = vst [vmem:[#allocation2 + $0x18] sm:$0xff] %v1243
    %1333 = vst [vmem:[#allocation2 + $0x20] sm:$0xff] %v1328
    // Predicated region
    $region38: #{tpu_custom_call.1} parent=1 // pred_check
      _
    $region39: #{tpu_custom_call.1} parent=1 // pred_check_branch
      %1335 = sbr.rel (0) target = $region41
    $region40: #{tpu_custom_call.1} parent=1 // pred_region
      %1337 = vsyncadd [#allocation3], 0
      %s1339 = sshll.u32 [#allocation2], 4
      %s1340 = int_to_ptr.vmem [resolvable:$true] %s1339
      %s1341 = sshll.u32 %s9, 4
      %s1342 = int_to_ptr.hbm [resolvable:$true] %s1341
      %1344 = dma.vmem_to_hbm [thread:$0]  %s1340, 640, %s1342, [#allocation3]
    $region41: #{tpu_custom_call.1} parent=1 // pred_fallthru
      _
    // Predicated region
    $region42: #{tpu_custom_call.1} parent=1 // pred_check
      _
    $region43: #{tpu_custom_call.1} parent=1 // pred_check_branch
      %1346 = sbr.rel (0) target = $region45
    $region44: #{tpu_custom_call.1} parent=1 // pred_region
      %1348 = dma.done [#allocation3], 640
    $region45: #{tpu_custom_call.1} parent=1 // pred_fallthru
      _
    %1349 = vsyncpa [#allocation3], 1

</llo_original>
